<compile_context>
chip_gen: v6e
topology: v6e:2x2x1
jax: 0.10.0
libtpu: 0.0.40
codegen_flags: <defaults>
</compile_context>

<pallas_src>
import functools

import jax
import jax.numpy as jnp
from jax.experimental import pallas as pl
from jax.experimental.pallas import tpu as pltpu

_LANE = 128


def _round_up(n, m):
    return ((n + m - 1) // m) * m


def _cdiv(a, b):
    return (a + b - 1) // b


def _leaky_relu(v, negative_slope=0.01):
    # PyTorch F.leaky_relu default negative_slope = 0.01
    return jnp.where(v >= 0, v, negative_slope * v)


def _tpu_config():
    """Per-generation tiling / VMEM budget. Conservative fallback = v7x-sized."""
    try:
        vmem_bytes = int(pltpu.get_tpu_info().vmem_capacity_bytes)
    except Exception:
        vmem_bytes = 64 * 1024 * 1024
    if vmem_bytes <= 64 * 1024 * 1024:
        # v7x: 64 MiB VMEM per TC, 2 TCs -> want >= 2 grid steps for megacore.
        return {"vmem_limit": 40 * 1024 * 1024, "tb_max": 1024, "min_steps": 2}
    # v5e / v6e: 128 MiB physical VMEM, single TensorCore.
    return {"vmem_limit": 96 * 1024 * 1024, "tb_max": 2048, "min_steps": 1}


def fc_model_kernel(x_ref, w1_ref, b1_ref, w2_ref, b2_ref,
                    w3_ref, b3_ref, w4_ref, b4_ref, o_ref):
    x = x_ref[...]                      # (TB, d_in_p) bf16 — no cast needed

    # input layer: bf16 MXU inputs, f32 accumulate; elementwise math in f32.
    h = jnp.dot(x, w1_ref[...], preferred_element_type=jnp.float32)
    h = _leaky_relu(h + b1_ref[...])

    # dropout(0.3) -> identity in eval mode

    # hidden layer
    h = jnp.dot(h.astype(w2_ref.dtype), w2_ref[...],
                preferred_element_type=jnp.float32)
    h = _leaky_relu(h + b2_ref[...])

    # last_lin
    h = jnp.dot(h.astype(w3_ref.dtype), w3_ref[...],
                preferred_element_type=jnp.float32)
    h = _leaky_relu(h + b3_ref[...])

    # classifier: Flatten (no-op) + Linear -> lane-dense (TB, 128) logit slab
    logits = jnp.dot(h.astype(w4_ref.dtype), w4_ref[...],
                     preferred_element_type=jnp.float32) + b4_ref[...]
    o_ref[...] = logits.astype(o_ref.dtype)   # bf16 writeback


def prepare_params(params, weight_dtype=jnp.bfloat16):
    """Zero-pad every layer to 128-lane multiples and cast weights to bf16.

    Zero padding is exact for this network: padded activation columns are
    leaky_relu(0 + 0) = 0 and meet zero rows in the next weight, so the real
    logits are unaffected.
    """
    prepped = {}
    for i in range(1, 5):
        w = params[f"w{i}"]
        b = params[f"b{i}"]
        fi, fo = w.shape
        fip, fop = _round_up(fi, _LANE), _round_up(fo, _LANE)
        wp = jnp.zeros((fip, fop), weight_dtype).at[:fi, :fo].set(
            w.astype(weight_dtype))
        bp = jnp.zeros((1, fop), jnp.float32).at[:, :fo].set(
            b.astype(jnp.float32))
        prepped[f"w{i}"] = wp
        prepped[f"b{i}"] = bp
    return prepped


@functools.partial(jax.jit,
                   static_argnames=("classes", "tb", "b_pad", "vmem_limit"))
def _fc_forward_jit(x_nchw, prepped, *, classes, tb, b_pad, vmem_limit):
    B = x_nchw.shape[0]

    d_in_p = prepped["w1"].shape[0]
    d1p = prepped["w1"].shape[1]
    d2p = prepped["w2"].shape[1]
    d3p = prepped["w3"].shape[1]
    classes_p = prepped["w4"].shape[1]

    # nn.Flatten on NCHW, cast to bf16 (MXU input dtype) and pad in one shot —
    # no separately materialized f32 staging copy, minimal batch padding.
    x_flat = x_nchw.reshape(B, -1).astype(jnp.bfloat16)
    d_in = x_flat.shape[1]
    pad_b = b_pad - B
    pad_f = d_in_p - d_in
    if pad_b or pad_f:
        x_flat = jnp.pad(x_flat, ((0, pad_b), (0, pad_f)))

    grid = (b_pad // tb,)

    operands = (
        x_flat,
        prepped["w1"], prepped["b1"],
        prepped["w2"], prepped["b2"],
        prepped["w3"], prepped["b3"],
        prepped["w4"], prepped["b4"],
    )

    # x tiles over the batch (double-buffered by default); weights/biases use
    # constant index_maps and a single buffer so they are DMA'd once and stay
    # VMEM-resident across grid steps without wasting a second buffer.
    in_specs = [pl.BlockSpec((tb, d_in_p), lambda i: (i, 0))]
    for k in range(1, 5):
        in_specs.append(pl.BlockSpec(prepped[f"w{k}"].shape, lambda i: (0, 0),
                                     pipeline_mode=pl.Buffered(1)))
        in_specs.append(pl.BlockSpec(prepped[f"b{k}"].shape, lambda i: (0, 0),
                                     pipeline_mode=pl.Buffered(1)))

    flops = 2 * b_pad * (d_in_p * d1p + d1p * d2p + d2p * d3p
                         + d3p * classes_p)
    bytes_accessed = (
        int(x_flat.size) * 2                                   # bf16 x
        + sum(int(prepped[f"w{k}"].size) * prepped[f"w{k}"].dtype.itemsize
              + int(prepped[f"b{k}"].size) * 4 for k in range(1, 5))
        + b_pad * classes_p * 2                                # bf16 logits
    )

    out = pl.pallas_call(
        fc_model_kernel,
        out_shape=jax.ShapeDtypeStruct((b_pad, classes_p), jnp.bfloat16),
        grid=grid,
        in_specs=in_specs,
        out_specs=pl.BlockSpec((tb, classes_p), lambda i: (i, 0)),
        compiler_params=pltpu.CompilerParams(
            dimension_semantics=("parallel",),   # v7x: shard batch over 2 TCs
            vmem_limit_bytes=vmem_limit,
        ),
        cost_estimate=pl.CostEstimate(
            flops=flops, transcendentals=0, bytes_accessed=bytes_accessed),
    )(*operands)

    # Strip batch padding + class-lane padding; hand back f32 logits.
    return out[:B, :classes].astype(jnp.float32)


def fc_model_forward(x_nchw, prepped, classes, tb_max=None):
    """x_nchw: (B, C, H, W); prepped: output of prepare_params."""
    cfg = _tpu_config()
    if tb_max is None:
        tb_max = cfg["tb_max"]

    B = int(x_nchw.shape[0])
    # Pick the number of batch tiles first, then size TB to it, so the batch
    # padding is at most 7 rows instead of "round B up to tb_max".
    num_tiles = max(_cdiv(B, tb_max), 1)
    if cfg["min_steps"] > 1 and B >= 16:
        num_tiles = max(num_tiles, cfg["min_steps"])   # keep both v7x TCs busy
    tb = _round_up(_cdiv(B, num_tiles), 8)
    b_pad = _round_up(B, tb)

    return _fc_forward_jit(x_nchw, prepped, classes=classes, tb=tb,
                           b_pad=b_pad, vmem_limit=cfg["vmem_limit"])


def init_params(key, in_channels, image_shape, classes):
    """Deterministic init matching the FC_model layer shapes.
    Weights stored transposed as (in_features, out_features)."""
    d_in = in_channels * image_shape ** 2
    d1 = image_shape * 5
    d2 = image_shape * 2
    d3 = image_shape

    dims = [(d_in, d1), (d1, d2), (d2, d3), (d3, classes)]
    params = {}
    keys = jax.random.split(key, 2 * len(dims))
    for i, (fan_in, fan_out) in enumerate(dims):
        bound = 1.0 / jnp.sqrt(fan_in)  # PyTorch nn.Linear default init range
        w = jax.random.uniform(keys[2 * i], (fan_in, fan_out),
                               minval=-bound, maxval=bound, dtype=jnp.float32)
        b = jax.random.uniform(keys[2 * i + 1], (1, fan_out),
                               minval=-bound, maxval=bound, dtype=jnp.float32)
        params[f"w{i + 1}"] = w
        params[f"b{i + 1}"] = b
    return params


def reference_forward_prepped(x_nchw, prepped, classes):
    """Pure-JAX reference mirroring the kernel's bf16/f32 mixed path."""
    B = x_nchw.shape[0]
    h = x_nchw.reshape(B, -1).astype(jnp.bfloat16)
    d_in_p = prepped["w1"].shape[0]
    if h.shape[1] != d_in_p:
        h = jnp.pad(h, ((0, 0), (0, d_in_p - h.shape[1])))
    h = jnp.dot(h, prepped["w1"], preferred_element_type=jnp.float32)
    h = _leaky_relu(h + prepped["b1"])
    for i in range(2, 4):
        w, b = prepped[f"w{i}"], prepped[f"b{i}"]
        h = _leaky_relu(jnp.dot(h.astype(w.dtype), w,
                                preferred_element_type=jnp.float32) + b)
    w, b = prepped["w4"], prepped["b4"]
    out = jnp.dot(h.astype(w.dtype), w,
                  preferred_element_type=jnp.float32) + b
    return out[:, :classes]


def reference_forward_f32(x_nchw, params):
    """Full-precision, unpadded reference (loose semantic check)."""
    B = x_nchw.shape[0]
    h = x_nchw.reshape(B, -1)
    h = _leaky_relu(h @ params["w1"] + params["b1"])
    h = _leaky_relu(h @ params["w2"] + params["b2"])
    h = _leaky_relu(h @ params["w3"] + params["b3"])
    return h @ params["w4"] + params["b4"]


if __name__ == "__main__":
    # Small shapes consistent with the module: batch=2, channels=4, image 16x16
    B, C, S = 2, 4, 16
    CLASSES = 10

    key = jax.random.PRNGKey(0)
    kx, kp = jax.random.split(key)

    x = jax.random.normal(kx, (B, C, S, S), dtype=jnp.float32)
    params = init_params(kp, in_channels=C, image_shape=S, classes=CLASSES)
    prepped = prepare_params(params)  # 128-lane padded, bf16 weights

    out = fc_model_forward(x, prepped, CLASSES)
    out = jax.block_until_ready(out)
    assert out.shape == (B, CLASSES), out.shape

    # Same-precision-path reference (bf16 x / weights, f32 accumulate).
    ref = reference_forward_prepped(x, prepped, CLASSES)
    assert jnp.allclose(out, ref, atol=2e-2, rtol=2e-2), \
        "mismatch vs bf16-path reference"

    # Loose semantic check vs. the original full-f32 model.
    ref_f32 = reference_forward_f32(x, params)
    assert jnp.allclose(out, ref_f32, atol=5e-2, rtol=5e-2), \
        "mismatch vs f32 reference"

    print("KERNEL_OK")
</pallas_src>

<mosaic_0001>
module attributes {stable_mosaic.version = 11 : i64} {
  func.func @fc_model_kernel(%arg0: i32, %arg1: memref<8x1024xbf16, #tpu.memory_space<vmem>>, %arg2: memref<1024x128xbf16, #tpu.memory_space<vmem>>, %arg3: memref<1x128xf32, #tpu.memory_space<vmem>>, %arg4: memref<128x128xbf16, #tpu.memory_space<vmem>>, %arg5: memref<1x128xf32, #tpu.memory_space<vmem>>, %arg6: memref<128x128xbf16, #tpu.memory_space<vmem>>, %arg7: memref<1x128xf32, #tpu.memory_space<vmem>>, %arg8: memref<128x128xbf16, #tpu.memory_space<vmem>>, %arg9: memref<1x128xf32, #tpu.memory_space<vmem>>, %arg10: memref<8x128xbf16, #tpu.memory_space<vmem>>) attributes {dimension_semantics = [#tpu.dimension_semantics<parallel>], iteration_bounds = array<i64: 1>, scalar_prefetch = 0 : i64, scratch_operands = 0 : i64, tpu.core_type = #tpu.core_type<tc>, window_params = [{transform_indices = @transform_0, window_bounds = array<i64: 8, 1024>}, {pipeline_mode = #tpu.pipeline_mode<synchronous>, transform_indices = @transform_1, window_bounds = array<i64: 1024, 128>}, {pipeline_mode = #tpu.pipeline_mode<synchronous>, transform_indices = @transform_2, window_bounds = array<i64: 1, 128>}, {pipeline_mode = #tpu.pipeline_mode<synchronous>, transform_indices = @transform_3, window_bounds = array<i64: 128, 128>}, {pipeline_mode = #tpu.pipeline_mode<synchronous>, transform_indices = @transform_4, window_bounds = array<i64: 1, 128>}, {pipeline_mode = #tpu.pipeline_mode<synchronous>, transform_indices = @transform_5, window_bounds = array<i64: 128, 128>}, {pipeline_mode = #tpu.pipeline_mode<synchronous>, transform_indices = @transform_6, window_bounds = array<i64: 1, 128>}, {pipeline_mode = #tpu.pipeline_mode<synchronous>, transform_indices = @transform_7, window_bounds = array<i64: 128, 128>}, {pipeline_mode = #tpu.pipeline_mode<synchronous>, transform_indices = @transform_8, window_bounds = array<i64: 1, 128>}, {transform_indices = @transform_9, window_bounds = array<i64: 8, 128>}]} {
    %c0 = arith.constant 0 : index
    %c0_0 = arith.constant 0 : index
    %0 = vector.load %arg1[%c0, %c0_0] : memref<8x1024xbf16, #tpu.memory_space<vmem>>, vector<8x1024xbf16>
    %c0_1 = arith.constant 0 : index
    %c0_2 = arith.constant 0 : index
    %1 = vector.load %arg2[%c0_1, %c0_2] : memref<1024x128xbf16, #tpu.memory_space<vmem>>, vector<1024x128xbf16>
    %cst = arith.constant dense<0.000000e+00> : vector<8x128xf32>
    %2 = tpu.matmul %0, %1, %cst {dimension_numbers = #tpu.dot_dimension_numbers<[1], [0], [0], [1], [0, 0, 1, 1], [], []>} : vector<8x1024xbf16>, vector<1024x128xbf16>, vector<8x128xf32> -> vector<8x128xf32>
    %c0_3 = arith.constant 0 : index
    %c0_4 = arith.constant 0 : index
    %3 = vector.load %arg3[%c0_3, %c0_4] : memref<1x128xf32, #tpu.memory_space<vmem>>, vector<1x128xf32>
    %4 = vector.broadcast %3 : vector<1x128xf32> to vector<8x128xf32>
    %5 = arith.addf %2, %4 : vector<8x128xf32>
    %cst_5 = arith.constant 0.000000e+00 : f32
    %6 = vector.broadcast %cst_5 : f32 to vector<8x128xf32>
    %7 = arith.cmpf oge, %5, %6 : vector<8x128xf32>
    %cst_6 = arith.constant 0.00999999977 : f32
    %8 = vector.broadcast %cst_6 : f32 to vector<8x128xf32>
    %9 = arith.mulf %8, %5 : vector<8x128xf32>
    %10 = arith.select %7, %5, %9 : vector<8x128xi1>, vector<8x128xf32>
    %11 = arith.truncf %10 : vector<8x128xf32> to vector<8x128xbf16>
    %c0_7 = arith.constant 0 : index
    %c0_8 = arith.constant 0 : index
    %12 = vector.load %arg4[%c0_7, %c0_8] : memref<128x128xbf16, #tpu.memory_space<vmem>>, vector<128x128xbf16>
    %cst_9 = arith.constant dense<0.000000e+00> : vector<8x128xf32>
    %13 = tpu.matmul %11, %12, %cst_9 {dimension_numbers = #tpu.dot_dimension_numbers<[1], [0], [0], [1], [0, 0, 1, 1], [], []>} : vector<8x128xbf16>, vector<128x128xbf16>, vector<8x128xf32> -> vector<8x128xf32>
    %c0_10 = arith.constant 0 : index
    %c0_11 = arith.constant 0 : index
    %14 = vector.load %arg5[%c0_10, %c0_11] : memref<1x128xf32, #tpu.memory_space<vmem>>, vector<1x128xf32>
    %15 = vector.broadcast %14 : vector<1x128xf32> to vector<8x128xf32>
    %16 = arith.addf %13, %15 : vector<8x128xf32>
    %cst_12 = arith.constant 0.000000e+00 : f32
    %17 = vector.broadcast %cst_12 : f32 to vector<8x128xf32>
    %18 = arith.cmpf oge, %16, %17 : vector<8x128xf32>
    %cst_13 = arith.constant 0.00999999977 : f32
    %19 = vector.broadcast %cst_13 : f32 to vector<8x128xf32>
    %20 = arith.mulf %19, %16 : vector<8x128xf32>
    %21 = arith.select %18, %16, %20 : vector<8x128xi1>, vector<8x128xf32>
    %22 = arith.truncf %21 : vector<8x128xf32> to vector<8x128xbf16>
    %c0_14 = arith.constant 0 : index
    %c0_15 = arith.constant 0 : index
    %23 = vector.load %arg6[%c0_14, %c0_15] : memref<128x128xbf16, #tpu.memory_space<vmem>>, vector<128x128xbf16>
    %cst_16 = arith.constant dense<0.000000e+00> : vector<8x128xf32>
    %24 = tpu.matmul %22, %23, %cst_16 {dimension_numbers = #tpu.dot_dimension_numbers<[1], [0], [0], [1], [0, 0, 1, 1], [], []>} : vector<8x128xbf16>, vector<128x128xbf16>, vector<8x128xf32> -> vector<8x128xf32>
    %c0_17 = arith.constant 0 : index
    %c0_18 = arith.constant 0 : index
    %25 = vector.load %arg7[%c0_17, %c0_18] : memref<1x128xf32, #tpu.memory_space<vmem>>, vector<1x128xf32>
    %26 = vector.broadcast %25 : vector<1x128xf32> to vector<8x128xf32>
    %27 = arith.addf %24, %26 : vector<8x128xf32>
    %cst_19 = arith.constant 0.000000e+00 : f32
    %28 = vector.broadcast %cst_19 : f32 to vector<8x128xf32>
    %29 = arith.cmpf oge, %27, %28 : vector<8x128xf32>
    %cst_20 = arith.constant 0.00999999977 : f32
    %30 = vector.broadcast %cst_20 : f32 to vector<8x128xf32>
    %31 = arith.mulf %30, %27 : vector<8x128xf32>
    %32 = arith.select %29, %27, %31 : vector<8x128xi1>, vector<8x128xf32>
    %33 = arith.truncf %32 : vector<8x128xf32> to vector<8x128xbf16>
    %c0_21 = arith.constant 0 : index
    %c0_22 = arith.constant 0 : index
    %34 = vector.load %arg8[%c0_21, %c0_22] : memref<128x128xbf16, #tpu.memory_space<vmem>>, vector<128x128xbf16>
    %cst_23 = arith.constant dense<0.000000e+00> : vector<8x128xf32>
    %35 = tpu.matmul %33, %34, %cst_23 {dimension_numbers = #tpu.dot_dimension_numbers<[1], [0], [0], [1], [0, 0, 1, 1], [], []>} : vector<8x128xbf16>, vector<128x128xbf16>, vector<8x128xf32> -> vector<8x128xf32>
    %c0_24 = arith.constant 0 : index
    %c0_25 = arith.constant 0 : index
    %36 = vector.load %arg9[%c0_24, %c0_25] : memref<1x128xf32, #tpu.memory_space<vmem>>, vector<1x128xf32>
    %37 = vector.broadcast %36 : vector<1x128xf32> to vector<8x128xf32>
    %38 = arith.addf %35, %37 : vector<8x128xf32>
    %39 = arith.truncf %38 : vector<8x128xf32> to vector<8x128xbf16>
    %c0_26 = arith.constant 0 : index
    %c0_27 = arith.constant 0 : index
    %40 = vector.load %arg10[%c0_26, %c0_27] : memref<8x128xbf16, #tpu.memory_space<vmem>>, vector<8x128xbf16>
    tpu.vector_store %arg10[%c0_26, %c0_27], %39 {strides = array<i32>} : memref<8x128xbf16, #tpu.memory_space<vmem>>, vector<8x128xbf16>,
    return
  }
  func.func @transform_0(%arg0: i32) -> (i32, i32) {
    %c0_i32 = arith.constant 0 : i32
    %c0_i32_0 = arith.constant 0 : i32
    return %arg0, %c0_i32 : i32, i32
  }
  func.func @transform_1(%arg0: i32) -> (i32, i32) {
    %c0_i32 = arith.constant 0 : i32
    %c0_i32_0 = arith.constant 0 : i32
    %c0_i32_1 = arith.constant 0 : i32
    return %c0_i32, %c0_i32_0 : i32, i32
  }
  func.func @transform_2(%arg0: i32) -> (i32, i32) {
    %c0_i32 = arith.constant 0 : i32
    %c0_i32_0 = arith.constant 0 : i32
    %c0_i32_1 = arith.constant 0 : i32
    return %c0_i32, %c0_i32_0 : i32, i32
  }
  func.func @transform_3(%arg0: i32) -> (i32, i32) {
    %c0_i32 = arith.constant 0 : i32
    %c0_i32_0 = arith.constant 0 : i32
    %c0_i32_1 = arith.constant 0 : i32
    return %c0_i32, %c0_i32_0 : i32, i32
  }
  func.func @transform_4(%arg0: i32) -> (i32, i32) {
    %c0_i32 = arith.constant 0 : i32
    %c0_i32_0 = arith.constant 0 : i32
    %c0_i32_1 = arith.constant 0 : i32
    return %c0_i32, %c0_i32_0 : i32, i32
  }
  func.func @transform_5(%arg0: i32) -> (i32, i32) {
    %c0_i32 = arith.constant 0 : i32
    %c0_i32_0 = arith.constant 0 : i32
    %c0_i32_1 = arith.constant 0 : i32
    return %c0_i32, %c0_i32_0 : i32, i32
  }
  func.func @transform_6(%arg0: i32) -> (i32, i32) {
    %c0_i32 = arith.constant 0 : i32
    %c0_i32_0 = arith.constant 0 : i32
    %c0_i32_1 = arith.constant 0 : i32
    return %c0_i32, %c0_i32_0 : i32, i32
  }
  func.func @transform_7(%arg0: i32) -> (i32, i32) {
    %c0_i32 = arith.constant 0 : i32
    %c0_i32_0 = arith.constant 0 : i32
    %c0_i32_1 = arith.constant 0 : i32
    return %c0_i32, %c0_i32_0 : i32, i32
  }
  func.func @transform_8(%arg0: i32) -> (i32, i32) {
    %c0_i32 = arith.constant 0 : i32
    %c0_i32_0 = arith.constant 0 : i32
    %c0_i32_1 = arith.constant 0 : i32
    return %c0_i32, %c0_i32_0 : i32, i32
  }
  func.func @transform_9(%arg0: i32) -> (i32, i32) {
    %c0_i32 = arith.constant 0 : i32
    %c0_i32_0 = arith.constant 0 : i32
    return %arg0, %c0_i32 : i32, i32
  }
}

</mosaic_0001>

<llo_original>
// kernel: _fc_forward_jit.1
$region0: #{_fc_forward_jit.1}
  #allocation0 [shape = 'u32[]', space=smem, size = 0x4, offset = 0x4, fixed_abs, tag = 'smem constant byte address 0x4 - core index']
  #allocation1 [shape = 'u32[144,128]{1,0:T(1,128)}', space=vmem, size = 0x12000, scoped, tag = 'internal scratch']
  %s0 = inlined_call_operand.vmem [shape: bf16[8,1024], index: 0, kind: input, shape index: {}]
  %s1 = inlined_call_operand.hbm [shape: bf16[1024,128], index: 1, kind: input, shape index: {}]
  %s2 = inlined_call_operand.vmem [shape: f32[1,128], index: 2, kind: input, shape index: {}]
  %s3 = inlined_call_operand.vmem [shape: bf16[128,128], index: 3, kind: input, shape index: {}]
  %s4 = inlined_call_operand.vmem [shape: f32[1,128], index: 4, kind: input, shape index: {}]
  %s5 = inlined_call_operand.vmem [shape: bf16[128,128], index: 5, kind: input, shape index: {}]
  %s6 = inlined_call_operand.vmem [shape: f32[1,128], index: 6, kind: input, shape index: {}]
  %s7 = inlined_call_operand.vmem [shape: bf16[128,128], index: 7, kind: input, shape index: {}]
  %s8 = inlined_call_operand.vmem [shape: f32[1,128], index: 8, kind: input, shape index: {}]
  %s9 = inlined_call_operand.vmem [shape: bf16[8,128], index: 9, kind: output, shape index: {}]
  %s10 = sld [smem:[#allocation0]]
  $region50: #{_fc_forward_jit.1} parent=0
    _
  %s12 = ssub.s32 1, %s10
  %s13 = scalar_select 0, %s12, %s10
  $region1: #{_fc_forward_jit.1} parent=0
    #allocation2 [shape = 'u8[262144]{0}', space=vmem, size = 0x40000, scoped, tag = 'input window, operand 1, single buffered']
    #allocation3 [shape = 's32[1]{0}', space=sflag, size = 0x4, scoped, tag = 'scoped memory for _fc_forward_jit.1']
    %14 = vsyncpa [#allocation3], 0
    // Predicated region
    $region2: #{_fc_forward_jit.1} parent=1 // pred_check
      _
    $region3: #{_fc_forward_jit.1} parent=1 // pred_check_branch
      %16 = sbr.rel (0) target = $region5
    $region4: #{_fc_forward_jit.1} parent=1 // pred_region
      _
    $region5: #{_fc_forward_jit.1} parent=1 // pred_fallthru
      _
    // Predicated region
    $region6: #{_fc_forward_jit.1} parent=1 // pred_check
      _
    $region7: #{_fc_forward_jit.1} parent=1 // pred_check_branch
      %18 = sbr.rel (0) target = $region9
    $region8: #{_fc_forward_jit.1} parent=1 // pred_region
      %s20 = ssub.s32 8192, 8192
      %21 = vsyncadd [#allocation3], %s20
      %s22 = sshll.u32 [#allocation2], 4
      %s23 = int_to_ptr.vmem [resolvable:$true] %s22
      %28 = dma.hbm_to_vmem [thread:$0]  %s1, 8192, %s23, [#allocation3], 64, 64, 4
    $region9: #{_fc_forward_jit.1} parent=1 // pred_fallthru
      _
    // Predicated region
    $region10: #{_fc_forward_jit.1} parent=1 // pred_check
      _
    $region11: #{_fc_forward_jit.1} parent=1 // pred_check_branch
      %30 = sbr.rel (0) target = $region13
    $region12: #{_fc_forward_jit.1} parent=1 // pred_region
      _
    $region13: #{_fc_forward_jit.1} parent=1 // pred_fallthru
      _
    // Predicated region
    $region14: #{_fc_forward_jit.1} parent=1 // pred_check
      _
    $region15: #{_fc_forward_jit.1} parent=1 // pred_check_branch
      %32 = sbr.rel (0) target = $region17
    $region16: #{_fc_forward_jit.1} parent=1 // pred_region
      _
    $region17: #{_fc_forward_jit.1} parent=1 // pred_fallthru
      _
    // Predicated region
    $region18: #{_fc_forward_jit.1} parent=1 // pred_check
      _
    $region19: #{_fc_forward_jit.1} parent=1 // pred_check_branch
      %34 = sbr.rel (0) target = $region21
    $region20: #{_fc_forward_jit.1} parent=1 // pred_region
      _
    $region21: #{_fc_forward_jit.1} parent=1 // pred_fallthru
      _
    // Predicated region
    $region22: #{_fc_forward_jit.1} parent=1 // pred_check
      _
    $region23: #{_fc_forward_jit.1} parent=1 // pred_check_branch
      %36 = sbr.rel (0) target = $region25
    $region24: #{_fc_forward_jit.1} parent=1 // pred_region
      _
    $region25: #{_fc_forward_jit.1} parent=1 // pred_fallthru
      _
    // Predicated region
    $region26: #{_fc_forward_jit.1} parent=1 // pred_check
      _
    $region27: #{_fc_forward_jit.1} parent=1 // pred_check_branch
      %38 = sbr.rel (0) target = $region29
    $region28: #{_fc_forward_jit.1} parent=1 // pred_region
      _
    $region29: #{_fc_forward_jit.1} parent=1 // pred_fallthru
      _
    // Predicated region
    $region30: #{_fc_forward_jit.1} parent=1 // pred_check
      _
    $region31: #{_fc_forward_jit.1} parent=1 // pred_check_branch
      %40 = sbr.rel (0) target = $region33
    $region32: #{_fc_forward_jit.1} parent=1 // pred_region
      _
    $region33: #{_fc_forward_jit.1} parent=1 // pred_fallthru
      _
    // Predicated region
    $region34: #{_fc_forward_jit.1} parent=1 // pred_check
      _
    $region35: #{_fc_forward_jit.1} parent=1 // pred_check_branch
      %42 = sbr.rel (0) target = $region37
    $region36: #{_fc_forward_jit.1} parent=1 // pred_region
      _
    $region37: #{_fc_forward_jit.1} parent=1 // pred_fallthru
      _
    // Predicated region
    $region38: #{_fc_forward_jit.1} parent=1 // pred_check
      _
    $region39: #{_fc_forward_jit.1} parent=1 // pred_check_branch
      %44 = sbr.rel (0) target = $region41
    $region40: #{_fc_forward_jit.1} parent=1 // pred_region
      %45 = dma.done [#allocation3], 8192
    $region41: #{_fc_forward_jit.1} parent=1 // pred_fallthru
      _
    %v47 = vld [vmem:[%s0] sm:$0xff]
    %v48 = vld [vmem:[%s0 + $0x8] sm:$0xff]
    %v49 = vld [vmem:[%s0 + $0x10] sm:$0xff]
    %v50 = vld [vmem:[%s0 + $0x18] sm:$0xff]
    %v51 = vld [vmem:[#allocation2] sm:$0xf]
    %v52 = vld [vmem:[#allocation2 + $0x4] sm:$0xf]
    %v53 = vld [vmem:[#allocation2 + $0x8] sm:$0xf]
    %v54 = vld [vmem:[#allocation2 + $0xc] sm:$0xf]
    %v55 = vld [vmem:[#allocation2 + $0x10] sm:$0xf]
    %v56 = vld [vmem:[#allocation2 + $0x14] sm:$0xf]
    %v57 = vld [vmem:[#allocation2 + $0x18] sm:$0xf]
    %v58 = vld [vmem:[#allocation2 + $0x1c] sm:$0xf]
    %v59 = vld [vmem:[#allocation2 + $0x20] sm:$0xf]
    %v60 = vld [vmem:[#allocation2 + $0x24] sm:$0xf]
    %v61 = vld [vmem:[#allocation2 + $0x28] sm:$0xf]
    %v62 = vld [vmem:[#allocation2 + $0x2c] sm:$0xf]
    %v63 = vld [vmem:[#allocation2 + $0x30] sm:$0xf]
    %v64 = vld [vmem:[#allocation2 + $0x34] sm:$0xf]
    %v65 = vld [vmem:[#allocation2 + $0x38] sm:$0xf]
    %v66 = vld [vmem:[#allocation2 + $0x3c] sm:$0xf]
    %v67 = vld [vmem:[#allocation2 + $0x40] sm:$0xf]
    %v68 = vld [vmem:[#allocation2 + $0x44] sm:$0xf]
    %v69 = vld [vmem:[#allocation2 + $0x48] sm:$0xf]
    %v70 = vld [vmem:[#allocation2 + $0x4c] sm:$0xf]
    %v71 = vld [vmem:[#allocation2 + $0x50] sm:$0xf]
    %v72 = vld [vmem:[#allocation2 + $0x54] sm:$0xf]
    %v73 = vld [vmem:[#allocation2 + $0x58] sm:$0xf]
    %v74 = vld [vmem:[#allocation2 + $0x5c] sm:$0xf]
    %v75 = vld [vmem:[#allocation2 + $0x60] sm:$0xf]
    %v76 = vld [vmem:[#allocation2 + $0x64] sm:$0xf]
    %v77 = vld [vmem:[#allocation2 + $0x68] sm:$0xf]
    %v78 = vld [vmem:[#allocation2 + $0x6c] sm:$0xf]
    %v79 = vld [vmem:[#allocation2 + $0x70] sm:$0xf]
    %v80 = vld [vmem:[#allocation2 + $0x74] sm:$0xf]
    %v81 = vld [vmem:[#allocation2 + $0x78] sm:$0xf]
    %v82 = vld [vmem:[#allocation2 + $0x7c] sm:$0xf]
    %v83 = vld [vmem:[#allocation2 + $0x80] sm:$0xf]
    %v84 = vld [vmem:[#allocation2 + $0x84] sm:$0xf]
    %v85 = vld [vmem:[#allocation2 + $0x88] sm:$0xf]
    %v86 = vld [vmem:[#allocation2 + $0x8c] sm:$0xf]
    %v87 = vld [vmem:[#allocation2 + $0x90] sm:$0xf]
    %v88 = vld [vmem:[#allocation2 + $0x94] sm:$0xf]
    %v89 = vld [vmem:[#allocation2 + $0x98] sm:$0xf]
    %v90 = vld [vmem:[#allocation2 + $0x9c] sm:$0xf]
    %v91 = vld [vmem:[#allocation2 + $0xa0] sm:$0xf]
    %v92 = vld [vmem:[#allocation2 + $0xa4] sm:$0xf]
    %v93 = vld [vmem:[#allocation2 + $0xa8] sm:$0xf]
    %v94 = vld [vmem:[#allocation2 + $0xac] sm:$0xf]
    %v95 = vld [vmem:[#allocation2 + $0xb0] sm:$0xf]
    %v96 = vld [vmem:[#allocation2 + $0xb4] sm:$0xf]
    %v97 = vld [vmem:[#allocation2 + $0xb8] sm:$0xf]
    %v98 = vld [vmem:[#allocation2 + $0xbc] sm:$0xf]
    %v99 = vld [vmem:[#allocation2 + $0xc0] sm:$0xf]
    %v100 = vld [vmem:[#allocation2 + $0xc4] sm:$0xf]
    %v101 = vld [vmem:[#allocation2 + $0xc8] sm:$0xf]
    %v102 = vld [vmem:[#allocation2 + $0xcc] sm:$0xf]
    %v103 = vld [vmem:[#allocation2 + $0xd0] sm:$0xf]
    %v104 = vld [vmem:[#allocation2 + $0xd4] sm:$0xf]
    %v105 = vld [vmem:[#allocation2 + $0xd8] sm:$0xf]
    %v106 = vld [vmem:[#allocation2 + $0xdc] sm:$0xf]
    %v107 = vld [vmem:[#allocation2 + $0xe0] sm:$0xf]
    %v108 = vld [vmem:[#allocation2 + $0xe4] sm:$0xf]
    %v109 = vld [vmem:[#allocation2 + $0xe8] sm:$0xf]
    %v110 = vld [vmem:[#allocation2 + $0xec] sm:$0xf]
    %v111 = vld [vmem:[#allocation2 + $0xf0] sm:$0xf]
    %v112 = vld [vmem:[#allocation2 + $0xf4] sm:$0xf]
    %v113 = vld [vmem:[#allocation2 + $0xf8] sm:$0xf]
    %v114 = vld [vmem:[#allocation2 + $0xfc] sm:$0xf]
    %v115 = vld [vmem:[#allocation2 + $0x100] sm:$0xf]
    %v116 = vld [vmem:[#allocation2 + $0x104] sm:$0xf]
    %v117 = vld [vmem:[#allocation2 + $0x108] sm:$0xf]
    %v118 = vld [vmem:[#allocation2 + $0x10c] sm:$0xf]
    %v119 = vld [vmem:[#allocation2 + $0x110] sm:$0xf]
    %v120 = vld [vmem:[#allocation2 + $0x114] sm:$0xf]
    %v121 = vld [vmem:[#allocation2 + $0x118] sm:$0xf]
    %v122 = vld [vmem:[#allocation2 + $0x11c] sm:$0xf]
    %v123 = vld [vmem:[#allocation2 + $0x120] sm:$0xf]
    %v124 = vld [vmem:[#allocation2 + $0x124] sm:$0xf]
    %v125 = vld [vmem:[#allocation2 + $0x128] sm:$0xf]
    %v126 = vld [vmem:[#allocation2 + $0x12c] sm:$0xf]
    %v127 = vld [vmem:[#allocation2 + $0x130] sm:$0xf]
    %v128 = vld [vmem:[#allocation2 + $0x134] sm:$0xf]
    %v129 = vld [vmem:[#allocation2 + $0x138] sm:$0xf]
    %v130 = vld [vmem:[#allocation2 + $0x13c] sm:$0xf]
    %v131 = vld [vmem:[#allocation2 + $0x140] sm:$0xf]
    %v132 = vld [vmem:[#allocation2 + $0x144] sm:$0xf]
    %v133 = vld [vmem:[#allocation2 + $0x148] sm:$0xf]
    %v134 = vld [vmem:[#allocation2 + $0x14c] sm:$0xf]
    %v135 = vld [vmem:[#allocation2 + $0x150] sm:$0xf]
    %v136 = vld [vmem:[#allocation2 + $0x154] sm:$0xf]
    %v137 = vld [vmem:[#allocation2 + $0x158] sm:$0xf]
    %v138 = vld [vmem:[#allocation2 + $0x15c] sm:$0xf]
    %v139 = vld [vmem:[#allocation2 + $0x160] sm:$0xf]
    %v140 = vld [vmem:[#allocation2 + $0x164] sm:$0xf]
    %v141 = vld [vmem:[#allocation2 + $0x168] sm:$0xf]
    %v142 = vld [vmem:[#allocation2 + $0x16c] sm:$0xf]
    %v143 = vld [vmem:[#allocation2 + $0x170] sm:$0xf]
    %v144 = vld [vmem:[#allocation2 + $0x174] sm:$0xf]
    %v145 = vld [vmem:[#allocation2 + $0x178] sm:$0xf]
    %v146 = vld [vmem:[#allocation2 + $0x17c] sm:$0xf]
    %v147 = vld [vmem:[#allocation2 + $0x180] sm:$0xf]
    %v148 = vld [vmem:[#allocation2 + $0x184] sm:$0xf]
    %v149 = vld [vmem:[#allocation2 + $0x188] sm:$0xf]
    %v150 = vld [vmem:[#allocation2 + $0x18c] sm:$0xf]
    %v151 = vld [vmem:[#allocation2 + $0x190] sm:$0xf]
    %v152 = vld [vmem:[#allocation2 + $0x194] sm:$0xf]
    %v153 = vld [vmem:[#allocation2 + $0x198] sm:$0xf]
    %v154 = vld [vmem:[#allocation2 + $0x19c] sm:$0xf]
    %v155 = vld [vmem:[#allocation2 + $0x1a0] sm:$0xf]
    %v156 = vld [vmem:[#allocation2 + $0x1a4] sm:$0xf]
    %v157 = vld [vmem:[#allocation2 + $0x1a8] sm:$0xf]
    %v158 = vld [vmem:[#allocation2 + $0x1ac] sm:$0xf]
    %v159 = vld [vmem:[#allocation2 + $0x1b0] sm:$0xf]
    %v160 = vld [vmem:[#allocation2 + $0x1b4] sm:$0xf]
    %v161 = vld [vmem:[#allocation2 + $0x1b8] sm:$0xf]
    %v162 = vld [vmem:[#allocation2 + $0x1bc] sm:$0xf]
    %v163 = vld [vmem:[#allocation2 + $0x1c0] sm:$0xf]
    %v164 = vld [vmem:[#allocation2 + $0x1c4] sm:$0xf]
    %v165 = vld [vmem:[#allocation2 + $0x1c8] sm:$0xf]
    %v166 = vld [vmem:[#allocation2 + $0x1cc] sm:$0xf]
    %v167 = vld [vmem:[#allocation2 + $0x1d0] sm:$0xf]
    %v168 = vld [vmem:[#allocation2 + $0x1d4] sm:$0xf]
    %v169 = vld [vmem:[#allocation2 + $0x1d8] sm:$0xf]
    %v170 = vld [vmem:[#allocation2 + $0x1dc] sm:$0xf]
    %v171 = vld [vmem:[#allocation2 + $0x1e0] sm:$0xf]
    %v172 = vld [vmem:[#allocation2 + $0x1e4] sm:$0xf]
    %v173 = vld [vmem:[#allocation2 + $0x1e8] sm:$0xf]
    %v174 = vld [vmem:[#allocation2 + $0x1ec] sm:$0xf]
    %v175 = vld [vmem:[#allocation2 + $0x1f0] sm:$0xf]
    %v176 = vld [vmem:[#allocation2 + $0x1f4] sm:$0xf]
    %v177 = vld [vmem:[#allocation2 + $0x1f8] sm:$0xf]
    %v178 = vld [vmem:[#allocation2 + $0x1fc] sm:$0xf]
    %v179 = vld [vmem:[%s2] sm:$0x1]
    %v181 = vlaneseq
    %v182 = vshrl.u32 %v181, 7
    %v183 = vsub.s32 0, %v182
    %v184 = vrot.slane %v179, %v183
    %v190 = vunpack.c.l.b16 %v47
    %v191 = vunpack.c.h.b16 %v47
    %v192 = vunpack.c.l.b16 %v48
    %v193 = vunpack.c.h.b16 %v48
    %v194 = vunpack.c.l.b16 %v49
    %v195 = vunpack.c.h.b16 %v49
    %v196 = vunpack.c.l.b16 %v50
    %v197 = vunpack.c.h.b16 %v50
    %v198 = vpack.c.b16 %v190, %v190
    %v199 = vpack.c.b16 %v191, %v191
    %v200 = vpack.c.b16 %v192, %v192
    %v201 = vpack.c.b16 %v193, %v193
    %v202 = vpack.c.b16 %v194, %v194
    %v203 = vpack.c.b16 %v195, %v195
    %v204 = vpack.c.b16 %v196, %v196
    %v205 = vpack.c.b16 %v197, %v197
    %v342 = vunpack.c.l.b16 %v51
    %v343 = vunpack.c.l.b16 %v52
    %v344 = vunpack.c.l.b16 %v53
    %v345 = vunpack.c.l.b16 %v54
    %v346 = vunpack.c.l.b16 %v55
    %v347 = vunpack.c.l.b16 %v56
    %v348 = vunpack.c.l.b16 %v57
    %v349 = vunpack.c.l.b16 %v58
    %v350 = vunpack.c.l.b16 %v59
    %v351 = vunpack.c.l.b16 %v60
    %v352 = vunpack.c.l.b16 %v61
    %v353 = vunpack.c.l.b16 %v62
    %v354 = vunpack.c.l.b16 %v63
    %v355 = vunpack.c.l.b16 %v64
    %v356 = vunpack.c.l.b16 %v65
    %v357 = vunpack.c.l.b16 %v66
    %v358 = vunpack.c.l.b16 %v67
    %v359 = vunpack.c.l.b16 %v68
    %v360 = vunpack.c.l.b16 %v69
    %v361 = vunpack.c.l.b16 %v70
    %v362 = vunpack.c.l.b16 %v71
    %v363 = vunpack.c.l.b16 %v72
    %v364 = vunpack.c.l.b16 %v73
    %v365 = vunpack.c.l.b16 %v74
    %v366 = vunpack.c.l.b16 %v75
    %v367 = vunpack.c.l.b16 %v76
    %v368 = vunpack.c.l.b16 %v77
    %v369 = vunpack.c.l.b16 %v78
    %v370 = vunpack.c.l.b16 %v79
    %v371 = vunpack.c.l.b16 %v80
    %v372 = vunpack.c.l.b16 %v81
    %v373 = vunpack.c.l.b16 %v82
    %v374 = vunpack.c.l.b16 %v83
    %v375 = vunpack.c.l.b16 %v84
    %v376 = vunpack.c.l.b16 %v85
    %v377 = vunpack.c.l.b16 %v86
    %v378 = vunpack.c.l.b16 %v87
    %v379 = vunpack.c.l.b16 %v88
    %v380 = vunpack.c.l.b16 %v89
    %v381 = vunpack.c.l.b16 %v90
    %v382 = vunpack.c.l.b16 %v91
    %v383 = vunpack.c.l.b16 %v92
    %v384 = vunpack.c.l.b16 %v93
    %v385 = vunpack.c.l.b16 %v94
    %v386 = vunpack.c.l.b16 %v95
    %v387 = vunpack.c.l.b16 %v96
    %v388 = vunpack.c.l.b16 %v97
    %v389 = vunpack.c.l.b16 %v98
    %v390 = vunpack.c.l.b16 %v99
    %v391 = vunpack.c.l.b16 %v100
    %v392 = vunpack.c.l.b16 %v101
    %v393 = vunpack.c.l.b16 %v102
    %v394 = vunpack.c.l.b16 %v103
    %v395 = vunpack.c.l.b16 %v104
    %v396 = vunpack.c.l.b16 %v105
    %v397 = vunpack.c.l.b16 %v106
    %v398 = vunpack.c.l.b16 %v107
    %v399 = vunpack.c.l.b16 %v108
    %v400 = vunpack.c.l.b16 %v109
    %v401 = vunpack.c.l.b16 %v110
    %v402 = vunpack.c.l.b16 %v111
    %v403 = vunpack.c.l.b16 %v112
    %v404 = vunpack.c.l.b16 %v113
    %v405 = vunpack.c.l.b16 %v114
    %v406 = vunpack.c.l.b16 %v115
    %v407 = vunpack.c.l.b16 %v116
    %v408 = vunpack.c.l.b16 %v117
    %v409 = vunpack.c.l.b16 %v118
    %v410 = vunpack.c.l.b16 %v119
    %v411 = vunpack.c.l.b16 %v120
    %v412 = vunpack.c.l.b16 %v121
    %v413 = vunpack.c.l.b16 %v122
    %v414 = vunpack.c.l.b16 %v123
    %v415 = vunpack.c.l.b16 %v124
    %v416 = vunpack.c.l.b16 %v125
    %v417 = vunpack.c.l.b16 %v126
    %v418 = vunpack.c.l.b16 %v127
    %v419 = vunpack.c.l.b16 %v128
    %v420 = vunpack.c.l.b16 %v129
    %v421 = vunpack.c.l.b16 %v130
    %v422 = vunpack.c.l.b16 %v131
    %v423 = vunpack.c.l.b16 %v132
    %v424 = vunpack.c.l.b16 %v133
    %v425 = vunpack.c.l.b16 %v134
    %v426 = vunpack.c.l.b16 %v135
    %v427 = vunpack.c.l.b16 %v136
    %v428 = vunpack.c.l.b16 %v137
    %v429 = vunpack.c.l.b16 %v138
    %v430 = vunpack.c.l.b16 %v139
    %v431 = vunpack.c.l.b16 %v140
    %v432 = vunpack.c.l.b16 %v141
    %v433 = vunpack.c.l.b16 %v142
    %v434 = vunpack.c.l.b16 %v143
    %v435 = vunpack.c.l.b16 %v144
    %v436 = vunpack.c.l.b16 %v145
    %v437 = vunpack.c.l.b16 %v146
    %v438 = vunpack.c.l.b16 %v147
    %v439 = vunpack.c.l.b16 %v148
    %v440 = vunpack.c.l.b16 %v149
    %v441 = vunpack.c.l.b16 %v150
    %v442 = vunpack.c.l.b16 %v151
    %v443 = vunpack.c.l.b16 %v152
    %v444 = vunpack.c.l.b16 %v153
    %v445 = vunpack.c.l.b16 %v154
    %v446 = vunpack.c.l.b16 %v155
    %v447 = vunpack.c.l.b16 %v156
    %v448 = vunpack.c.l.b16 %v157
    %v449 = vunpack.c.l.b16 %v158
    %v450 = vunpack.c.l.b16 %v159
    %v451 = vunpack.c.l.b16 %v160
    %v452 = vunpack.c.l.b16 %v161
    %v453 = vunpack.c.l.b16 %v162
    %v454 = vunpack.c.l.b16 %v163
    %v455 = vunpack.c.l.b16 %v164
    %v456 = vunpack.c.l.b16 %v165
    %v457 = vunpack.c.l.b16 %v166
    %v458 = vunpack.c.l.b16 %v167
    %v459 = vunpack.c.l.b16 %v168
    %v460 = vunpack.c.l.b16 %v169
    %v461 = vunpack.c.l.b16 %v170
    %v462 = vunpack.c.l.b16 %v171
    %v463 = vunpack.c.l.b16 %v172
    %v464 = vunpack.c.l.b16 %v173
    %v465 = vunpack.c.l.b16 %v174
    %v466 = vunpack.c.l.b16 %v175
    %v467 = vunpack.c.l.b16 %v176
    %v468 = vunpack.c.l.b16 %v177
    %v469 = vunpack.c.l.b16 %v178
    %v470 = vpack.c.b16 %v343, %v342
    %v471 = vpack.c.b16 %v345, %v344
    %v472 = vpack.c.b16 %v347, %v346
    %v473 = vpack.c.b16 %v349, %v348
    %v474 = vpack.c.b16 %v351, %v350
    %v475 = vpack.c.b16 %v353, %v352
    %v476 = vpack.c.b16 %v355, %v354
    %v477 = vpack.c.b16 %v357, %v356
    %v478 = vpack.c.b16 %v359, %v358
    %v479 = vpack.c.b16 %v361, %v360
    %v480 = vpack.c.b16 %v363, %v362
    %v481 = vpack.c.b16 %v365, %v364
    %v482 = vpack.c.b16 %v367, %v366
    %v483 = vpack.c.b16 %v369, %v368
    %v484 = vpack.c.b16 %v371, %v370
    %v485 = vpack.c.b16 %v373, %v372
    %v486 = vpack.c.b16 %v375, %v374
    %v487 = vpack.c.b16 %v377, %v376
    %v488 = vpack.c.b16 %v379, %v378
    %v489 = vpack.c.b16 %v381, %v380
    %v490 = vpack.c.b16 %v383, %v382
    %v491 = vpack.c.b16 %v385, %v384
    %v492 = vpack.c.b16 %v387, %v386
    %v493 = vpack.c.b16 %v389, %v388
    %v494 = vpack.c.b16 %v391, %v390
    %v495 = vpack.c.b16 %v393, %v392
    %v496 = vpack.c.b16 %v395, %v394
    %v497 = vpack.c.b16 %v397, %v396
    %v498 = vpack.c.b16 %v399, %v398
    %v499 = vpack.c.b16 %v401, %v400
    %v500 = vpack.c.b16 %v403, %v402
    %v501 = vpack.c.b16 %v405, %v404
    %v502 = vpack.c.b16 %v407, %v406
    %v503 = vpack.c.b16 %v409, %v408
    %v504 = vpack.c.b16 %v411, %v410
    %v505 = vpack.c.b16 %v413, %v412
    %v506 = vpack.c.b16 %v415, %v414
    %v507 = vpack.c.b16 %v417, %v416
    %v508 = vpack.c.b16 %v419, %v418
    %v509 = vpack.c.b16 %v421, %v420
    %v510 = vpack.c.b16 %v423, %v422
    %v511 = vpack.c.b16 %v425, %v424
    %v512 = vpack.c.b16 %v427, %v426
    %v513 = vpack.c.b16 %v429, %v428
    %v514 = vpack.c.b16 %v431, %v430
    %v515 = vpack.c.b16 %v433, %v432
    %v516 = vpack.c.b16 %v435, %v434
    %v517 = vpack.c.b16 %v437, %v436
    %v518 = vpack.c.b16 %v439, %v438
    %v519 = vpack.c.b16 %v441, %v440
    %v520 = vpack.c.b16 %v443, %v442
    %v521 = vpack.c.b16 %v445, %v444
    %v522 = vpack.c.b16 %v447, %v446
    %v523 = vpack.c.b16 %v449, %v448
    %v524 = vpack.c.b16 %v451, %v450
    %v525 = vpack.c.b16 %v453, %v452
    %v526 = vpack.c.b16 %v455, %v454
    %v527 = vpack.c.b16 %v457, %v456
    %v528 = vpack.c.b16 %v459, %v458
    %v529 = vpack.c.b16 %v461, %v460
    %v530 = vpack.c.b16 %v463, %v462
    %v531 = vpack.c.b16 %v465, %v464
    %v532 = vpack.c.b16 %v467, %v466
    %v533 = vpack.c.b16 %v469, %v468
    %598 = vmatprep.subr.bf16.mxu0 0
    %599 = vmatpush1.bf16.msra.mxu0 %v477
    %600 = vmatprep.subr.bf16.mxu0 0
    %601 = vmatpush1.bf16.msra.mxu0 %v476
    %602 = vmatprep.subr.bf16.mxu0 0
    %603 = vmatpush1.bf16.msra.mxu0 %v475
    %604 = vmatprep.subr.bf16.mxu0 0
    %605 = vmatpush1.bf16.msra.mxu0 %v474
    %606 = vmatprep.subr.bf16.mxu0 0
    %607 = vmatpush1.bf16.msra.mxu0 %v473
    %608 = vmatprep.subr.bf16.mxu0 0
    %609 = vmatpush1.bf16.msra.mxu0 %v472
    %610 = vmatprep.subr.bf16.mxu0 0
    %611 = vmatpush1.bf16.msra.mxu0 %v471
    %612 = vmatprep.subr.bf16.mxu0 0
    %613 = vmatpush1.bf16.msra.mxu0 %v470
    %614 = vmatprep.subr.bf16.mxu0 0
    %615 = vmatpush2.bf16.msra.mxu0 %v485
    %616 = vmatprep.subr.bf16.mxu0 0
    %617 = vmatpush2.bf16.msra.mxu0 %v484
    %618 = vmatprep.subr.bf16.mxu0 0
    %619 = vmatpush2.bf16.msra.mxu0 %v483
    %620 = vmatprep.subr.bf16.mxu0 0
    %621 = vmatpush2.bf16.msra.mxu0 %v482
    %622 = vmatprep.subr.bf16.mxu0 0
    %623 = vmatpush2.bf16.msra.mxu0 %v481
    %624 = vmatprep.subr.bf16.mxu0 0
    %625 = vmatpush2.bf16.msra.mxu0 %v480
    %626 = vmatprep.subr.bf16.mxu0 0
    %627 = vmatpush2.bf16.msra.mxu0 %v479
    %628 = vmatprep.subr.bf16.mxu0 0
    %629 = vmatpush2.bf16.msra.mxu0 %v478
    %630 = vmatprep.mubr.bf16.mxu0 %v199
    %631 = vmatmul.mubr.bf16.gmra.mxu0 %v198
    %v632 = vpop.f32.mrf.mxu0
    %v633 = vadd.f32 %v184, %v632
    %v634 = vpop.f32.mrf.mxu0
    %v635 = vpop.f32.mrf.mxu0
    %v636 = vpop.f32.mrf.mxu0
    %637 = vdwg.mxu0
    %638 = vmatprep.subr.bf16.mxu0 0
    %639 = vmatpush1.bf16.msra.mxu0 %v493
    %640 = vmatprep.subr.bf16.mxu0 0
    %641 = vmatpush1.bf16.msra.mxu0 %v492
    %642 = vmatprep.subr.bf16.mxu0 0
    %643 = vmatpush1.bf16.msra.mxu0 %v491
    %644 = vmatprep.subr.bf16.mxu0 0
    %645 = vmatpush1.bf16.msra.mxu0 %v490
    %646 = vmatprep.subr.bf16.mxu0 0
    %647 = vmatpush1.bf16.msra.mxu0 %v489
    %648 = vmatprep.subr.bf16.mxu0 0
    %649 = vmatpush1.bf16.msra.mxu0 %v488
    %650 = vmatprep.subr.bf16.mxu0 0
    %651 = vmatpush1.bf16.msra.mxu0 %v487
    %652 = vmatprep.subr.bf16.mxu0 0
    %653 = vmatpush1.bf16.msra.mxu0 %v486
    %654 = vmatprep.subr.bf16.mxu0 0
    %655 = vmatpush2.bf16.msra.mxu0 %v501
    %656 = vmatprep.subr.bf16.mxu0 0
    %657 = vmatpush2.bf16.msra.mxu0 %v500
    %658 = vmatprep.subr.bf16.mxu0 0
    %659 = vmatpush2.bf16.msra.mxu0 %v499
    %660 = vmatprep.subr.bf16.mxu0 0
    %661 = vmatpush2.bf16.msra.mxu0 %v498
    %662 = vmatprep.subr.bf16.mxu0 0
    %663 = vmatpush2.bf16.msra.mxu0 %v497
    %664 = vmatprep.subr.bf16.mxu0 0
    %665 = vmatpush2.bf16.msra.mxu0 %v496
    %666 = vmatprep.subr.bf16.mxu0 0
    %667 = vmatpush2.bf16.msra.mxu0 %v495
    %668 = vmatprep.subr.bf16.mxu0 0
    %669 = vmatpush2.bf16.msra.mxu0 %v494
    %670 = vmatprep.mubr.bf16.mxu0 %v201
    %671 = vmatmul.mubr.bf16.gmra.mxu0 %v200
    %v672 = vpop.f32.mrf.mxu0
    %v673 = vadd.f32 %v633, %v672
    %v674 = vpop.f32.mrf.mxu0
    %v675 = vpop.f32.mrf.mxu0
    %v676 = vpop.f32.mrf.mxu0
    %677 = vdwg.mxu0
    %678 = vmatprep.subr.bf16.mxu0 0
    %679 = vmatpush1.bf16.msra.mxu0 %v509
    %680 = vmatprep.subr.bf16.mxu0 0
    %681 = vmatpush1.bf16.msra.mxu0 %v508
    %682 = vmatprep.subr.bf16.mxu0 0
    %683 = vmatpush1.bf16.msra.mxu0 %v507
    %684 = vmatprep.subr.bf16.mxu0 0
    %685 = vmatpush1.bf16.msra.mxu0 %v506
    %686 = vmatprep.subr.bf16.mxu0 0
    %687 = vmatpush1.bf16.msra.mxu0 %v505
    %688 = vmatprep.subr.bf16.mxu0 0
    %689 = vmatpush1.bf16.msra.mxu0 %v504
    %690 = vmatprep.subr.bf16.mxu0 0
    %691 = vmatpush1.bf16.msra.mxu0 %v503
    %692 = vmatprep.subr.bf16.mxu0 0
    %693 = vmatpush1.bf16.msra.mxu0 %v502
    %694 = vmatprep.subr.bf16.mxu0 0
    %695 = vmatpush2.bf16.msra.mxu0 %v517
    %696 = vmatprep.subr.bf16.mxu0 0
    %697 = vmatpush2.bf16.msra.mxu0 %v516
    %698 = vmatprep.subr.bf16.mxu0 0
    %699 = vmatpush2.bf16.msra.mxu0 %v515
    %700 = vmatprep.subr.bf16.mxu0 0
    %701 = vmatpush2.bf16.msra.mxu0 %v514
    %702 = vmatprep.subr.bf16.mxu0 0
    %703 = vmatpush2.bf16.msra.mxu0 %v513
    %704 = vmatprep.subr.bf16.mxu0 0
    %705 = vmatpush2.bf16.msra.mxu0 %v512
    %706 = vmatprep.subr.bf16.mxu0 0
    %707 = vmatpush2.bf16.msra.mxu0 %v511
    %708 = vmatprep.subr.bf16.mxu0 0
    %709 = vmatpush2.bf16.msra.mxu0 %v510
    %710 = vmatprep.mubr.bf16.mxu0 %v203
    %711 = vmatmul.mubr.bf16.gmra.mxu0 %v202
    %v712 = vpop.f32.mrf.mxu0
    %v713 = vadd.f32 %v673, %v712
    %v714 = vpop.f32.mrf.mxu0
    %v715 = vpop.f32.mrf.mxu0
    %v716 = vpop.f32.mrf.mxu0
    %717 = vdwg.mxu0
    %718 = vmatprep.subr.bf16.mxu0 0
    %719 = vmatpush1.bf16.msra.mxu0 %v525
    %720 = vmatprep.subr.bf16.mxu0 0
    %721 = vmatpush1.bf16.msra.mxu0 %v524
    %722 = vmatprep.subr.bf16.mxu0 0
    %723 = vmatpush1.bf16.msra.mxu0 %v523
    %724 = vmatprep.subr.bf16.mxu0 0
    %725 = vmatpush1.bf16.msra.mxu0 %v522
    %726 = vmatprep.subr.bf16.mxu0 0
    %727 = vmatpush1.bf16.msra.mxu0 %v521
    %728 = vmatprep.subr.bf16.mxu0 0
    %729 = vmatpush1.bf16.msra.mxu0 %v520
    %730 = vmatprep.subr.bf16.mxu0 0
    %731 = vmatpush1.bf16.msra.mxu0 %v519
    %732 = vmatprep.subr.bf16.mxu0 0
    %733 = vmatpush1.bf16.msra.mxu0 %v518
    %734 = vmatprep.subr.bf16.mxu0 0
    %735 = vmatpush2.bf16.msra.mxu0 %v533
    %736 = vmatprep.subr.bf16.mxu0 0
    %737 = vmatpush2.bf16.msra.mxu0 %v532
    %738 = vmatprep.subr.bf16.mxu0 0
    %739 = vmatpush2.bf16.msra.mxu0 %v531
    %740 = vmatprep.subr.bf16.mxu0 0
    %741 = vmatpush2.bf16.msra.mxu0 %v530
    %742 = vmatprep.subr.bf16.mxu0 0
    %743 = vmatpush2.bf16.msra.mxu0 %v529
    %744 = vmatprep.subr.bf16.mxu0 0
    %745 = vmatpush2.bf16.msra.mxu0 %v528
    %746 = vmatprep.subr.bf16.mxu0 0
    %747 = vmatpush2.bf16.msra.mxu0 %v527
    %748 = vmatprep.subr.bf16.mxu0 0
    %749 = vmatpush2.bf16.msra.mxu0 %v526
    %750 = vmatprep.mubr.bf16.mxu0 %v205
    %751 = vmatmul.mubr.bf16.gmra.mxu0 %v204
    %v752 = vpop.f32.mrf.mxu0
    %v753 = vadd.f32 %v713, %v752
    %v754 = vpop.f32.mrf.mxu0
    %v755 = vpop.f32.mrf.mxu0
    %v756 = vpop.f32.mrf.mxu0
    %757 = vdwg.mxu0
    %vm758 = vcmp.ge.f32.partialorder %v753, 0.0
    %v759 = vmul.f32 %v753, 0.01
    %v760 = vsel %vm758, %v753, %v759
    %v761 = vpack.c.bf16 %v760, %v760
    %v762 = vld [vmem:[%s3] sm:$0xf]
    %v763 = vld [vmem:[%s3 + $0x4] sm:$0xf]
    %v764 = vld [vmem:[%s3 + $0x8] sm:$0xf]
    %v765 = vld [vmem:[%s3 + $0xc] sm:$0xf]
    %v766 = vld [vmem:[%s3 + $0x10] sm:$0xf]
    %v767 = vld [vmem:[%s3 + $0x14] sm:$0xf]
    %v768 = vld [vmem:[%s3 + $0x18] sm:$0xf]
    %v769 = vld [vmem:[%s3 + $0x1c] sm:$0xf]
    %v770 = vld [vmem:[%s3 + $0x20] sm:$0xf]
    %v771 = vld [vmem:[%s3 + $0x24] sm:$0xf]
    %v772 = vld [vmem:[%s3 + $0x28] sm:$0xf]
    %v773 = vld [vmem:[%s3 + $0x2c] sm:$0xf]
    %v774 = vld [vmem:[%s3 + $0x30] sm:$0xf]
    %v775 = vld [vmem:[%s3 + $0x34] sm:$0xf]
    %v776 = vld [vmem:[%s3 + $0x38] sm:$0xf]
    %v777 = vld [vmem:[%s3 + $0x3c] sm:$0xf]
    %v778 = vld [vmem:[%s4] sm:$0x1]
    %v780 = vlaneseq
    %v781 = vshrl.u32 %v780, 7
    %v782 = vsub.s32 0, %v781
    %v783 = vrot.slane %v778, %v782
    %v801 = vunpack.c.l.b16 %v762
    %v802 = vunpack.c.l.b16 %v763
    %v803 = vunpack.c.l.b16 %v764
    %v804 = vunpack.c.l.b16 %v765
    %v805 = vunpack.c.l.b16 %v766
    %v806 = vunpack.c.l.b16 %v767
    %v807 = vunpack.c.l.b16 %v768
    %v808 = vunpack.c.l.b16 %v769
    %v809 = vunpack.c.l.b16 %v770
    %v810 = vunpack.c.l.b16 %v771
    %v811 = vunpack.c.l.b16 %v772
    %v812 = vunpack.c.l.b16 %v773
    %v813 = vunpack.c.l.b16 %v774
    %v814 = vunpack.c.l.b16 %v775
    %v815 = vunpack.c.l.b16 %v776
    %v816 = vunpack.c.l.b16 %v777
    %v817 = vpack.c.b16 %v802, %v801
    %v818 = vpack.c.b16 %v804, %v803
    %v819 = vpack.c.b16 %v806, %v805
    %v820 = vpack.c.b16 %v808, %v807
    %v821 = vpack.c.b16 %v810, %v809
    %v822 = vpack.c.b16 %v812, %v811
    %v823 = vpack.c.b16 %v814, %v813
    %v824 = vpack.c.b16 %v816, %v815
    %833 = vmatprep.subr.bf16.mxu0 0
    %834 = vmatpush1.bf16.msra.mxu0 %v824
    %835 = vmatprep.subr.bf16.mxu0 0
    %836 = vmatpush1.bf16.msra.mxu0 %v823
    %837 = vmatprep.subr.bf16.mxu0 0
    %838 = vmatpush1.bf16.msra.mxu0 %v822
    %839 = vmatprep.subr.bf16.mxu0 0
    %840 = vmatpush1.bf16.msra.mxu0 %v821
    %841 = vmatprep.subr.bf16.mxu0 0
    %842 = vmatpush1.bf16.msra.mxu0 %v820
    %843 = vmatprep.subr.bf16.mxu0 0
    %844 = vmatpush1.bf16.msra.mxu0 %v819
    %845 = vmatprep.subr.bf16.mxu0 0
    %846 = vmatpush1.bf16.msra.mxu0 %v818
    %847 = vmatprep.subr.bf16.mxu0 0
    %848 = vmatpush1.bf16.msra.mxu0 %v817
    %849 = vmatprep.subr.bf16.mxu0 0
    %850 = vmatpush2.bf16.msra.mxu0 0
    %851 = vmatprep.subr.bf16.mxu0 0
    %852 = vmatpush2.bf16.msra.mxu0 0
    %853 = vmatprep.subr.bf16.mxu0 0
    %854 = vmatpush2.bf16.msra.mxu0 0
    %855 = vmatprep.subr.bf16.mxu0 0
    %856 = vmatpush2.bf16.msra.mxu0 0
    %857 = vmatprep.subr.bf16.mxu0 0
    %858 = vmatpush2.bf16.msra.mxu0 0
    %859 = vmatprep.subr.bf16.mxu0 0
    %860 = vmatpush2.bf16.msra.mxu0 0
    %861 = vmatprep.subr.bf16.mxu0 0
    %862 = vmatpush2.bf16.msra.mxu0 0
    %863 = vmatprep.subr.bf16.mxu0 0
    %864 = vmatpush2.bf16.msra.mxu0 0
    %865 = vmatprep.mubr.bf16.mxu0 0
    %866 = vmatmul.mubr.bf16.gmra.mxu0 %v761
    %v867 = vpop.f32.mrf.mxu0
    %v868 = vadd.f32 %v783, %v867
    %v869 = vpop.f32.mrf.mxu0
    %v870 = vpop.f32.mrf.mxu0
    %v871 = vpop.f32.mrf.mxu0
    %872 = vdwg.mxu0
    %vm873 = vcmp.ge.f32.partialorder %v868, 0.0
    %v874 = vmul.f32 %v868, 0.01
    %v875 = vsel %vm873, %v868, %v874
    %v876 = vpack.c.bf16 %v875, %v875
    %v877 = vld [vmem:[%s5] sm:$0xf]
    %v878 = vld [vmem:[%s5 + $0x4] sm:$0xf]
    %v879 = vld [vmem:[%s5 + $0x8] sm:$0xf]
    %v880 = vld [vmem:[%s5 + $0xc] sm:$0xf]
    %v881 = vld [vmem:[%s5 + $0x10] sm:$0xf]
    %v882 = vld [vmem:[%s5 + $0x14] sm:$0xf]
    %v883 = vld [vmem:[%s5 + $0x18] sm:$0xf]
    %v884 = vld [vmem:[%s5 + $0x1c] sm:$0xf]
    %v885 = vld [vmem:[%s5 + $0x20] sm:$0xf]
    %v886 = vld [vmem:[%s5 + $0x24] sm:$0xf]
    %v887 = vld [vmem:[%s5 + $0x28] sm:$0xf]
    %v888 = vld [vmem:[%s5 + $0x2c] sm:$0xf]
    %v889 = vld [vmem:[%s5 + $0x30] sm:$0xf]
    %v890 = vld [vmem:[%s5 + $0x34] sm:$0xf]
    %v891 = vld [vmem:[%s5 + $0x38] sm:$0xf]
    %v892 = vld [vmem:[%s5 + $0x3c] sm:$0xf]
    %v893 = vld [vmem:[%s6] sm:$0x1]
    %v895 = vlaneseq
    %v896 = vshrl.u32 %v895, 7
    %v897 = vsub.s32 0, %v896
    %v898 = vrot.slane %v893, %v897
    %v916 = vunpack.c.l.b16 %v877
    %v917 = vunpack.c.l.b16 %v878
    %v918 = vunpack.c.l.b16 %v879
    %v919 = vunpack.c.l.b16 %v880
    %v920 = vunpack.c.l.b16 %v881
    %v921 = vunpack.c.l.b16 %v882
    %v922 = vunpack.c.l.b16 %v883
    %v923 = vunpack.c.l.b16 %v884
    %v924 = vunpack.c.l.b16 %v885
    %v925 = vunpack.c.l.b16 %v886
    %v926 = vunpack.c.l.b16 %v887
    %v927 = vunpack.c.l.b16 %v888
    %v928 = vunpack.c.l.b16 %v889
    %v929 = vunpack.c.l.b16 %v890
    %v930 = vunpack.c.l.b16 %v891
    %v931 = vunpack.c.l.b16 %v892
    %v932 = vpack.c.b16 %v917, %v916
    %v933 = vpack.c.b16 %v919, %v918
    %v934 = vpack.c.b16 %v921, %v920
    %v935 = vpack.c.b16 %v923, %v922
    %v936 = vpack.c.b16 %v925, %v924
    %v937 = vpack.c.b16 %v927, %v926
    %v938 = vpack.c.b16 %v929, %v928
    %v939 = vpack.c.b16 %v931, %v930
    %948 = vmatprep.subr.bf16.mxu0 0
    %949 = vmatpush1.bf16.msra.mxu0 %v939
    %950 = vmatprep.subr.bf16.mxu0 0
    %951 = vmatpush1.bf16.msra.mxu0 %v938
    %952 = vmatprep.subr.bf16.mxu0 0
    %953 = vmatpush1.bf16.msra.mxu0 %v937
    %954 = vmatprep.subr.bf16.mxu0 0
    %955 = vmatpush1.bf16.msra.mxu0 %v936
    %956 = vmatprep.subr.bf16.mxu0 0
    %957 = vmatpush1.bf16.msra.mxu0 %v935
    %958 = vmatprep.subr.bf16.mxu0 0
    %959 = vmatpush1.bf16.msra.mxu0 %v934
    %960 = vmatprep.subr.bf16.mxu0 0
    %961 = vmatpush1.bf16.msra.mxu0 %v933
    %962 = vmatprep.subr.bf16.mxu0 0
    %963 = vmatpush1.bf16.msra.mxu0 %v932
    %964 = vmatprep.subr.bf16.mxu0 0
    %965 = vmatpush2.bf16.msra.mxu0 0
    %966 = vmatprep.subr.bf16.mxu0 0
    %967 = vmatpush2.bf16.msra.mxu0 0
    %968 = vmatprep.subr.bf16.mxu0 0
    %969 = vmatpush2.bf16.msra.mxu0 0
    %970 = vmatprep.subr.bf16.mxu0 0
    %971 = vmatpush2.bf16.msra.mxu0 0
    %972 = vmatprep.subr.bf16.mxu0 0
    %973 = vmatpush2.bf16.msra.mxu0 0
    %974 = vmatprep.subr.bf16.mxu0 0
    %975 = vmatpush2.bf16.msra.mxu0 0
    %976 = vmatprep.subr.bf16.mxu0 0
    %977 = vmatpush2.bf16.msra.mxu0 0
    %978 = vmatprep.subr.bf16.mxu0 0
    %979 = vmatpush2.bf16.msra.mxu0 0
    %980 = vmatprep.mubr.bf16.mxu0 0
    %981 = vmatmul.mubr.bf16.gmra.mxu0 %v876
    %v982 = vpop.f32.mrf.mxu0
    %v983 = vadd.f32 %v898, %v982
    %v984 = vpop.f32.mrf.mxu0
    %v985 = vpop.f32.mrf.mxu0
    %v986 = vpop.f32.mrf.mxu0
    %987 = vdwg.mxu0
    %vm988 = vcmp.ge.f32.partialorder %v983, 0.0
    %v989 = vmul.f32 %v983, 0.01
    %v990 = vsel %vm988, %v983, %v989
    %v991 = vpack.c.bf16 %v990, %v990
    %v992 = vld [vmem:[%s7] sm:$0xf]
    %v993 = vld [vmem:[%s7 + $0x4] sm:$0xf]
    %v994 = vld [vmem:[%s7 + $0x8] sm:$0xf]
    %v995 = vld [vmem:[%s7 + $0xc] sm:$0xf]
    %v996 = vld [vmem:[%s7 + $0x10] sm:$0xf]
    %v997 = vld [vmem:[%s7 + $0x14] sm:$0xf]
    %v998 = vld [vmem:[%s7 + $0x18] sm:$0xf]
    %v999 = vld [vmem:[%s7 + $0x1c] sm:$0xf]
    %v1000 = vld [vmem:[%s7 + $0x20] sm:$0xf]
    %v1001 = vld [vmem:[%s7 + $0x24] sm:$0xf]
    %v1002 = vld [vmem:[%s7 + $0x28] sm:$0xf]
    %v1003 = vld [vmem:[%s7 + $0x2c] sm:$0xf]
    %v1004 = vld [vmem:[%s7 + $0x30] sm:$0xf]
    %v1005 = vld [vmem:[%s7 + $0x34] sm:$0xf]
    %v1006 = vld [vmem:[%s7 + $0x38] sm:$0xf]
    %v1007 = vld [vmem:[%s7 + $0x3c] sm:$0xf]
    %v1008 = vld [vmem:[%s8] sm:$0x1]
    %v1010 = vlaneseq
    %v1011 = vshrl.u32 %v1010, 7
    %v1012 = vsub.s32 0, %v1011
    %v1013 = vrot.slane %v1008, %v1012
    %v1031 = vunpack.c.l.b16 %v992
    %v1032 = vunpack.c.l.b16 %v993
    %v1033 = vunpack.c.l.b16 %v994
    %v1034 = vunpack.c.l.b16 %v995
    %v1035 = vunpack.c.l.b16 %v996
    %v1036 = vunpack.c.l.b16 %v997
    %v1037 = vunpack.c.l.b16 %v998
    %v1038 = vunpack.c.l.b16 %v999
    %v1039 = vunpack.c.l.b16 %v1000
    %v1040 = vunpack.c.l.b16 %v1001
    %v1041 = vunpack.c.l.b16 %v1002
    %v1042 = vunpack.c.l.b16 %v1003
    %v1043 = vunpack.c.l.b16 %v1004
    %v1044 = vunpack.c.l.b16 %v1005
    %v1045 = vunpack.c.l.b16 %v1006
    %v1046 = vunpack.c.l.b16 %v1007
    %v1047 = vpack.c.b16 %v1032, %v1031
    %v1048 = vpack.c.b16 %v1034, %v1033
    %v1049 = vpack.c.b16 %v1036, %v1035
    %v1050 = vpack.c.b16 %v1038, %v1037
    %v1051 = vpack.c.b16 %v1040, %v1039
    %v1052 = vpack.c.b16 %v1042, %v1041
    %v1053 = vpack.c.b16 %v1044, %v1043
    %v1054 = vpack.c.b16 %v1046, %v1045
    %1063 = vmatprep.subr.bf16.mxu0 0
    %1064 = vmatpush1.bf16.msra.mxu0 %v1054
    %1065 = vmatprep.subr.bf16.mxu0 0
    %1066 = vmatpush1.bf16.msra.mxu0 %v1053
    %1067 = vmatprep.subr.bf16.mxu0 0
    %1068 = vmatpush1.bf16.msra.mxu0 %v1052
    %1069 = vmatprep.subr.bf16.mxu0 0
    %1070 = vmatpush1.bf16.msra.mxu0 %v1051
    %1071 = vmatprep.subr.bf16.mxu0 0
    %1072 = vmatpush1.bf16.msra.mxu0 %v1050
    %1073 = vmatprep.subr.bf16.mxu0 0
    %1074 = vmatpush1.bf16.msra.mxu0 %v1049
    %1075 = vmatprep.subr.bf16.mxu0 0
    %1076 = vmatpush1.bf16.msra.mxu0 %v1048
    %1077 = vmatprep.subr.bf16.mxu0 0
    %1078 = vmatpush1.bf16.msra.mxu0 %v1047
    %1079 = vmatprep.subr.bf16.mxu0 0
    %1080 = vmatpush2.bf16.msra.mxu0 0
    %1081 = vmatprep.subr.bf16.mxu0 0
    %1082 = vmatpush2.bf16.msra.mxu0 0
    %1083 = vmatprep.subr.bf16.mxu0 0
    %1084 = vmatpush2.bf16.msra.mxu0 0
    %1085 = vmatprep.subr.bf16.mxu0 0
    %1086 = vmatpush2.bf16.msra.mxu0 0
    %1087 = vmatprep.subr.bf16.mxu0 0
    %1088 = vmatpush2.bf16.msra.mxu0 0
    %1089 = vmatprep.subr.bf16.mxu0 0
    %1090 = vmatpush2.bf16.msra.mxu0 0
    %1091 = vmatprep.subr.bf16.mxu0 0
    %1092 = vmatpush2.bf16.msra.mxu0 0
    %1093 = vmatprep.subr.bf16.mxu0 0
    %1094 = vmatpush2.bf16.msra.mxu0 0
    %1095 = vmatprep.mubr.bf16.mxu0 0
    %1096 = vmatmul.mubr.bf16.gmra.mxu0 %v991
    %v1097 = vpop.f32.mrf.mxu0
    %v1098 = vadd.f32 %v1013, %v1097
    %v1099 = vpop.f32.mrf.mxu0
    %v1100 = vpop.f32.mrf.mxu0
    %v1101 = vpop.f32.mrf.mxu0
    %1102 = vdwg.mxu0
    %v1103 = vpack.c.bf16 %v1098, %v1098
    %1104 = vst [vmem:[%s9] sm:$0xf] %v1103
    // Predicated region
    $region42: #{_fc_forward_jit.1} parent=1 // pred_check
      _
    $region43: #{_fc_forward_jit.1} parent=1 // pred_check_branch
      %1106 = sbr.rel (0) target = $region45
    $region44: #{_fc_forward_jit.1} parent=1 // pred_region
      _
    $region45: #{_fc_forward_jit.1} parent=1 // pred_fallthru
      _
    // Predicated region
    $region46: #{_fc_forward_jit.1} parent=1 // pred_check
      _
    $region47: #{_fc_forward_jit.1} parent=1 // pred_check_branch
      %1108 = sbr.rel (0) target = $region49
    $region48: #{_fc_forward_jit.1} parent=1 // pred_region
      _
    $region49: #{_fc_forward_jit.1} parent=1 // pred_fallthru
      _
    %1109 = vsyncpa [#allocation3], 1

</llo_original>
